<compile_context>
chip_gen: v5e
topology: v5e:2x2
jax: 0.10.0
libtpu: 0.0.40
codegen_flags: <defaults>
</compile_context>

<pallas_src>
import functools

import jax
import jax.numpy as jnp
from jax import lax
from jax.experimental import pallas as pl
from jax.experimental.pallas import tpu as pltpu


def _regular_ce_kernel(logits_ref, labels_ref, *rest, ignore_label, num_pixels,
                       tile, tiles_per_chunk, has_weights):
    """One (image, pixel-chunk, pixel-tile) step: masked CE, accumulate rows."""
    if has_weights:
        wts_ref, out_ref = rest
    else:
        (out_ref,) = rest
        wts_ref = None

    c = pl.program_id(1)   # pixel-chunk index (parallel)
    t = pl.program_id(2)   # tile index within chunk (sequential, accumulating)

    @pl.when(t == 0)
    def _():
        out_ref[...] = jnp.zeros_like(out_ref)

    x = logits_ref[0].astype(jnp.float32)        # (C, tile): classes on sublanes
    lbl = labels_ref[0]                          # (1, tile) int32

    # Global tile index (unclamped).  The BlockSpec index_map clamps the HBM
    # block index so DMA never goes out of range; here we mask instead:
    # any lane whose global pixel id >= H*W contributes zero.
    tile_idx = c * tiles_per_chunk + t
    pix = tile_idx * tile + lax.broadcasted_iota(jnp.int32, (1, tile), 1)
    in_bounds = pix < num_pixels

    # Numerically stable log-sum-exp over the class (sublane) axis.
    m = jnp.max(x, axis=0, keepdims=True)                              # (1, tile)
    lse = m + jnp.log(jnp.sum(jnp.exp(x - m), axis=0, keepdims=True))  # (1, tile)

    # Logit at the target class via one-hot compare along sublanes.
    cls = lax.broadcasted_iota(jnp.int32, x.shape, 0)                  # (C, tile)
    picked = jnp.sum(jnp.where(cls == lbl, x, 0.0), axis=0, keepdims=True)

    valid = jnp.logical_and(lbl != ignore_label, in_bounds)            # (1, tile)
    loss = lse - picked
    if has_weights:
        loss = loss * wts_ref[0].astype(jnp.float32)
    # NOTE: keep jnp.where (not arithmetic masking) so NaN/Inf from garbage
    # out-of-bounds lanes in the ragged last tile cannot propagate.
    loss = jnp.where(valid, loss, 0.0)

    # Accumulate lane-dense partials: row 0 = loss sum, row 1 = valid count.
    # Two direct slice RMWs (no cross-sublane concatenate / temporary).
    out_ref[0, 0:1, :] += loss
    out_ref[0, 1:2, :] += valid.astype(jnp.float32)


def regular_ce(logits, labels, semantic_weights=None, *, ignore_label=-1,
               max_tile_lanes=32768, vmem_budget_bytes=24 * 1024 * 1024):
    """JAX/Pallas equivalent of RegularCE.forward.

    logits: (N, C, H, W) float (f32 or bf16; cast to f32 in-kernel)
    labels: (N, H, W) int (ignore_label marks pixels to skip)
    semantic_weights: optional (N, H, W) float per-pixel weights
    Returns scalar float32: mean CE over non-ignored pixels.
    """
    # TODO(synk): per-class `weight` rescaling of nn.CrossEntropyLoss (module
    # default weight=None) is not implemented.
    # NOTE: labels outside [0, C) that are not ignore_label silently yield
    # loss = logsumexp (PyTorch would error).  All-ignored input returns NaN,
    # matching PyTorch's masked-mean behavior.
    N, C, H, W = logits.shape
    HW = H * W
    itemsize = jnp.dtype(logits.dtype).itemsize

    x = logits.reshape(N, C, HW)                           # free reshape (NCHW)
    lbl = labels.astype(jnp.int32).reshape(N, 1, HW)

    # --- Adaptive, VMEM-aware pixel tile -------------------------------------
    # Approximate VMEM bytes per pixel lane:
    #   2x double-buffered logits block + ~3 f32 working copies of the tile
    #   + labels / weights / resident output rows.
    per_lane = 2 * C * itemsize + 3 * C * 4 + 48
    budget_lanes = max(128, vmem_budget_bytes // per_lane)
    budget_lanes = min(budget_lanes, max_tile_lanes)

    if HW <= budget_lanes:
        tile_p = HW                                   # single full-extent tile
    else:
        tile_p = max(128, (budget_lanes // 128) * 128)

    num_tiles_total = pl.cdiv(HW, tile_p)

    # Split the tile axis into an outer "parallel" chunk axis so both
    # TensorCores (v7x megacore) get work even when N is 1 or odd.
    num_chunks = 2 if num_tiles_total >= 2 else 1
    tiles_per_chunk = pl.cdiv(num_tiles_total, num_chunks)
    max_block = num_tiles_total - 1

    def pix_block(n, c, t):
        # Clamp so the DMA'd HBM block index is always valid; redundant /
        # over-covered tiles are masked to zero inside the kernel.
        return (n, 0, jnp.minimum(c * tiles_per_chunk + t, max_block))

    has_weights = semantic_weights is not None
    inputs = [x, lbl]
    in_specs = [
        pl.BlockSpec((1, C, tile_p), pix_block),
        pl.BlockSpec((1, 1, tile_p), pix_block),
    ]
    if has_weights:
        inputs.append(semantic_weights.reshape(N, 1, HW))
        in_specs.append(pl.BlockSpec((1, 1, tile_p), pix_block))

    kernel = functools.partial(
        _regular_ce_kernel,
        ignore_label=ignore_label,
        num_pixels=HW,
        tile=tile_p,
        tiles_per_chunk=tiles_per_chunk,
        has_weights=has_weights,
    )

    partials = pl.pallas_call(
        kernel,
        out_shape=jax.ShapeDtypeStruct((N * num_chunks, 2, tile_p), jnp.float32),
        grid_spec=pltpu.PrefetchScalarGridSpec(
            num_scalar_prefetch=0,
            grid=(N, num_chunks, tiles_per_chunk),
            in_specs=in_specs,
            out_specs=pl.BlockSpec(
                (1, 2, tile_p), lambda n, c, t: (n * num_chunks + c, 0, 0)),
        ),
        compiler_params=pltpu.CompilerParams(
            dimension_semantics=("parallel", "parallel", "arbitrary"),
            vmem_limit_bytes=40 * 1024 * 1024),
    )(*inputs)

    sums = jnp.sum(partials, axis=(0, 2))   # (2,) -> [loss_sum, valid_count]
    return sums[0] / sums[1]


def _reference(logits, labels, semantic_weights=None, ignore_label=-1):
    """Pure-JAX reference mirroring nn.CrossEntropyLoss(reduction='none') + masked mean."""
    N, C, H, W = logits.shape
    x = jnp.transpose(logits, (0, 2, 3, 1)).reshape(-1, C).astype(jnp.float32)
    lbl = labels.astype(jnp.int32).reshape(-1)
    logp = jax.nn.log_softmax(x, axis=-1)
    safe = jnp.where(lbl == ignore_label, 0, lbl)
    ce = -jnp.take_along_axis(logp, safe[:, None], axis=-1)[:, 0]
    if semantic_weights is not None:
        ce = ce * semantic_weights.astype(jnp.float32).reshape(-1)
    valid = lbl != ignore_label
    return jnp.sum(jnp.where(valid, ce, 0.0)) / jnp.sum(valid.astype(jnp.float32))


if __name__ == "__main__":
    key = jax.random.PRNGKey(0)
    k1, k2, k3, k4, k5, k6, k7 = jax.random.split(key, 7)

    # --- test 1/2: small NCHW, no / with per-pixel weights -------------------
    N, C, H, W = 2, 4, 16, 16
    logits = jax.random.normal(k1, (N, C, H, W), dtype=jnp.float32)
    labels = jax.random.randint(k2, (N, H, W), 0, C, dtype=jnp.int32)
    ignore_mask = jax.random.bernoulli(k3, 0.2, (N, H, W))
    labels = jnp.where(ignore_mask, -1, labels)

    out = regular_ce(logits, labels, ignore_label=-1)
    jax.block_until_ready(out)
    ref = _reference(logits, labels, ignore_label=-1)
    assert jnp.allclose(out, ref, atol=1e-5, rtol=1e-5), (out, ref)

    sw = jax.random.uniform(k4, (N, H, W), dtype=jnp.float32, minval=0.5, maxval=2.0)
    out_w = regular_ce(logits, labels, semantic_weights=sw, ignore_label=-1)
    jax.block_until_ready(out_w)
    ref_w = _reference(logits, labels, semantic_weights=sw, ignore_label=-1)
    assert jnp.allclose(out_w, ref_w, atol=1e-5, rtol=1e-5), (out_w, ref_w)

    # --- test 3: exercise multi-tile, 2-chunk parallel split, ragged tail ----
    N2, C2, H2, W2 = 1, 4, 10, 15          # HW = 150 -> 2 tiles of 128, ragged
    logits2 = jax.random.normal(k5, (N2, C2, H2, W2), dtype=jnp.float32)
    labels2 = jax.random.randint(k6, (N2, H2, W2), 0, C2, dtype=jnp.int32)
    labels2 = jnp.where(jax.random.bernoulli(k7, 0.3, (N2, H2, W2)), -1, labels2)
    out2 = regular_ce(logits2, labels2, ignore_label=-1, max_tile_lanes=128)
    jax.block_until_ready(out2)
    ref2 = _reference(logits2, labels2, ignore_label=-1)
    assert jnp.allclose(out2, ref2, atol=1e-5, rtol=1e-5), (out2, ref2)

    # --- test 4: bf16 logits accepted directly (cast in-VMEM) ----------------
    out_bf = regular_ce(logits.astype(jnp.bfloat16), labels, ignore_label=-1)
    jax.block_until_ready(out_bf)
    ref_bf = _reference(logits.astype(jnp.bfloat16), labels, ignore_label=-1)
    assert jnp.allclose(out_bf, ref_bf, atol=1e-4, rtol=1e-4), (out_bf, ref_bf)

    print("KERNEL_OK")
</pallas_src>

<mosaic_0001>
module attributes {stable_mosaic.version = 11 : i64} {
  func.func @_regular_ce_kernel(%arg0: i32, %arg1: i32, %arg2: i32, %arg3: memref<1x4x256xf32, #tpu.memory_space<vmem>>, %arg4: memref<1x1x256xi32, #tpu.memory_space<vmem>>, %arg5: memref<1x2x256xf32, #tpu.memory_space<vmem>>) attributes {dimension_semantics = [#tpu.dimension_semantics<parallel>, #tpu.dimension_semantics<parallel>, #tpu.dimension_semantics<arbitrary>], iteration_bounds = array<i64: 2, 1, 1>, scalar_prefetch = 0 : i64, scratch_operands = 0 : i64, tpu.core_type = #tpu.core_type<tc>, window_params = [{transform_indices = @transform_0, window_bounds = array<i64: 1, 4, 256>}, {transform_indices = @transform_1, window_bounds = array<i64: 1, 1, 256>}, {transform_indices = @transform_2, window_bounds = array<i64: 1, 2, 256>}]} {
    %c0_i32 = arith.constant 0 : i32
    %0 = arith.cmpi eq, %arg2, %c0_i32 : i32
    %1 = arith.extui %0 : i1 to i32
    %c0_i32_0 = arith.constant 0 : i32
    %2 = arith.cmpi ne, %1, %c0_i32_0 : i32
    scf.if %2 {
      %cst_22 = arith.constant 0.000000e+00 : f32
      %51 = vector.broadcast %cst_22 : f32 to vector<1x2x256xf32>
      %c0_23 = arith.constant 0 : index
      %c0_24 = arith.constant 0 : index
      %c0_25 = arith.constant 0 : index
      %52 = vector.load %arg5[%c0_23, %c0_24, %c0_25] : memref<1x2x256xf32, #tpu.memory_space<vmem>>, vector<1x2x256xf32>
      tpu.vector_store %arg5[%c0_23, %c0_24, %c0_25], %51 {strides = array<i32>} : memref<1x2x256xf32, #tpu.memory_space<vmem>>, vector<1x2x256xf32>,
    } else {
    }
    %c0 = arith.constant 0 : index
    %c0_1 = arith.constant 0 : index
    %c0_2 = arith.constant 0 : index
    %3 = vector.load %arg3[%c0, %c0_1, %c0_2] : memref<1x4x256xf32, #tpu.memory_space<vmem>>, vector<1x4x256xf32>
    %4 = vector.shape_cast %3 : vector<1x4x256xf32> to vector<4x256xf32>
    %c0_3 = arith.constant 0 : index
    %c0_4 = arith.constant 0 : index
    %c0_5 = arith.constant 0 : index
    %5 = vector.load %arg4[%c0_3, %c0_4, %c0_5] : memref<1x1x256xi32, #tpu.memory_space<vmem>>, vector<1x1x256xi32>
    %6 = vector.shape_cast %5 : vector<1x1x256xi32> to vector<1x256xi32>
    %c1_i32 = arith.constant 1 : i32
    %7 = arith.muli %arg1, %c1_i32 : i32
    %8 = arith.addi %7, %arg2 : i32
    %c256_i32 = arith.constant 256 : i32
    %9 = arith.muli %8, %c256_i32 : i32
    %10 = tpu.iota {dimensions = array<i32: 1>} : vector<1x256xi32>
    %11 = vector.broadcast %9 : i32 to vector<1x256xi32>
    %12 = arith.addi %11, %10 : vector<1x256xi32>
    %c256_i32_6 = arith.constant 256 : i32
    %13 = vector.broadcast %c256_i32_6 : i32 to vector<1x256xi32>
    %14 = arith.cmpi slt, %12, %13 : vector<1x256xi32>
    %cst = arith.constant dense<0xFF800000> : vector<256xf32>
    %15 = vector.multi_reduction <maximumf>, %4, %cst [0] : vector<4x256xf32> to vector<256xf32>
    %16 = vector.shape_cast %15 : vector<256xf32> to vector<1x256xf32>
    %17 = vector.broadcast %16 : vector<1x256xf32> to vector<4x256xf32>
    %18 = arith.subf %4, %17 : vector<4x256xf32>
    %19 = math.exp %18 : vector<4x256xf32>
    %cst_7 = arith.constant dense<0.000000e+00> : vector<256xf32>
    %20 = vector.multi_reduction <add>, %19, %cst_7 [0] : vector<4x256xf32> to vector<256xf32>
    %21 = vector.shape_cast %20 : vector<256xf32> to vector<1x256xf32>
    %22 = math.log %21 : vector<1x256xf32>
    %23 = arith.addf %16, %22 : vector<1x256xf32>
    %24 = tpu.iota {dimensions = array<i32: 0>} : vector<4x256xi32>
    %25 = vector.broadcast %6 : vector<1x256xi32> to vector<4x256xi32>
    %26 = arith.cmpi eq, %24, %25 : vector<4x256xi32>
    %cst_8 = arith.constant 0.000000e+00 : f32
    %27 = vector.broadcast %cst_8 : f32 to vector<4x256xf32>
    %28 = arith.select %26, %4, %27 : vector<4x256xi1>, vector<4x256xf32>
    %cst_9 = arith.constant dense<0.000000e+00> : vector<256xf32>
    %29 = vector.multi_reduction <add>, %28, %cst_9 [0] : vector<4x256xf32> to vector<256xf32>
    %30 = vector.shape_cast %29 : vector<256xf32> to vector<1x256xf32>
    %c-1_i32 = arith.constant -1 : i32
    %31 = vector.broadcast %c-1_i32 : i32 to vector<1x256xi32>
    %32 = arith.cmpi ne, %6, %31 : vector<1x256xi32>
    %33 = arith.andi %32, %14 : vector<1x256xi1>
    %34 = arith.subf %23, %30 : vector<1x256xf32>
    %cst_10 = arith.constant 0.000000e+00 : f32
    %35 = vector.broadcast %cst_10 : f32 to vector<1x256xf32>
    %36 = arith.select %33, %34, %35 : vector<1x256xi1>, vector<1x256xf32>
    %c0_11 = arith.constant 0 : index
    %c0_12 = arith.constant 0 : index
    %c0_13 = arith.constant 0 : index
    %37 = vector.load %arg5[%c0_11, %c0_12, %c0_13] : memref<1x2x256xf32, #tpu.memory_space<vmem>>, vector<1x1x256xf32>
    %38 = vector.shape_cast %37 : vector<1x1x256xf32> to vector<1x256xf32>
    %39 = arith.addf %38, %36 : vector<1x256xf32>
    %c0_14 = arith.constant 0 : index
    %c0_15 = arith.constant 0 : index
    %c0_16 = arith.constant 0 : index
    %40 = vector.load %arg5[%c0_14, %c0_15, %c0_16] : memref<1x2x256xf32, #tpu.memory_space<vmem>>, vector<1x1x256xf32>
    %41 = vector.shape_cast %40 : vector<1x1x256xf32> to vector<1x256xf32>
    %42 = vector.shape_cast %39 : vector<1x256xf32> to vector<1x1x256xf32>
    tpu.vector_store %arg5[%c0_14, %c0_15, %c0_16], %42 {strides = array<i32>} : memref<1x2x256xf32, #tpu.memory_space<vmem>>, vector<1x1x256xf32>,
    %c0_17 = arith.constant 0 : index
    %c1 = arith.constant 1 : index
    %c0_18 = arith.constant 0 : index
    %43 = vector.load %arg5[%c0_17, %c1, %c0_18] : memref<1x2x256xf32, #tpu.memory_space<vmem>>, vector<1x1x256xf32>
    %44 = vector.shape_cast %43 : vector<1x1x256xf32> to vector<1x256xf32>
    %45 = arith.extui %33 : vector<1x256xi1> to vector<1x256xi32>
    %46 = arith.sitofp %45 : vector<1x256xi32> to vector<1x256xf32>
    %47 = arith.addf %44, %46 : vector<1x256xf32>
    %c0_19 = arith.constant 0 : index
    %c1_20 = arith.constant 1 : index
    %c0_21 = arith.constant 0 : index
    %48 = vector.load %arg5[%c0_19, %c1_20, %c0_21] : memref<1x2x256xf32, #tpu.memory_space<vmem>>, vector<1x1x256xf32>
    %49 = vector.shape_cast %48 : vector<1x1x256xf32> to vector<1x256xf32>
    %50 = vector.shape_cast %47 : vector<1x256xf32> to vector<1x1x256xf32>
    tpu.vector_store %arg5[%c0_19, %c1_20, %c0_21], %50 {strides = array<i32>} : memref<1x2x256xf32, #tpu.memory_space<vmem>>, vector<1x1x256xf32>,
    return
  }
  func.func @transform_0(%arg0: i32, %arg1: i32, %arg2: i32) -> (i32, i32, i32) {
    %c1_i32 = arith.constant 1 : i32
    %0 = arith.muli %arg1, %c1_i32 : i32
    %1 = arith.addi %0, %arg2 : i32
    %c0_i32 = arith.constant 0 : i32
    %2 = arith.minsi %1, %c0_i32 : i32
    %c0_i32_0 = arith.constant 0 : i32
    %c0_i32_1 = arith.constant 0 : i32
    return %arg0, %c0_i32_0, %2 : i32, i32, i32
  }
  func.func @transform_1(%arg0: i32, %arg1: i32, %arg2: i32) -> (i32, i32, i32) {
    %c1_i32 = arith.constant 1 : i32
    %0 = arith.muli %arg1, %c1_i32 : i32
    %1 = arith.addi %0, %arg2 : i32
    %c0_i32 = arith.constant 0 : i32
    %2 = arith.minsi %1, %c0_i32 : i32
    %c0_i32_0 = arith.constant 0 : i32
    %c0_i32_1 = arith.constant 0 : i32
    return %arg0, %c0_i32_0, %2 : i32, i32, i32
  }
  func.func @transform_2(%arg0: i32, %arg1: i32, %arg2: i32) -> (i32, i32, i32) {
    %c1_i32 = arith.constant 1 : i32
    %0 = arith.muli %arg0, %c1_i32 : i32
    %1 = arith.addi %0, %arg1 : i32
    %c0_i32 = arith.constant 0 : i32
    %c0_i32_0 = arith.constant 0 : i32
    %c0_i32_1 = arith.constant 0 : i32
    return %1, %c0_i32, %c0_i32_0 : i32, i32, i32
  }
}

</mosaic_0001>

<llo_original>
// kernel: tpu_custom_call.1
$region0: #{tpu_custom_call.1}
  #allocation0 [shape = 'u32[]', space=smem, size = 0x4, offset = 0x4, fixed_abs, tag = 'smem constant byte address 0x4 - core index']
  #allocation1 [shape = 'u32[72,128]{1,0:T(1,128)}', space=vmem, size = 0x9000, scoped, tag = 'internal scratch']
  %s0 = inlined_call_operand.hbm [shape: f32[2,4,256], index: 0, kind: input, shape index: {}]
  %s1 = inlined_call_operand.hbm [shape: s32[2,1,256], index: 1, kind: input, shape index: {}]
  %s2 = inlined_call_operand.hbm [shape: f32[2,2,256], index: 2, kind: output, shape index: {}]
  %s3 = sld [smem:[#allocation0]]
  $region53: #{tpu_custom_call.1} parent=0
    _
  %s5 = ssub.s32 1, %s3
  %s6 = scalar_select 0, %s5, %s3
  $region1: #{tpu_custom_call.1} parent=0
    #allocation2 [shape = 'u8[8192]{0}', space=vmem, size = 0x2000, scoped, tag = 'input window, operand 0']
    #allocation3 [shape = 's32[2]{0}', space=sflag, size = 0x8, scoped, tag = 'scoped memory for tpu_custom_call.1']
    #allocation4 [shape = 's32[2]{0}', space=sflag, size = 0x8, scoped, tag = 'scoped memory for tpu_custom_call.1']
    #allocation5 [shape = 'u8[2048]{0}', space=vmem, size = 0x800, scoped, tag = 'input window, operand 1']
    #allocation6 [shape = 's32[2]{0}', space=sflag, size = 0x8, scoped, tag = 'scoped memory for tpu_custom_call.1']
    #allocation7 [shape = 'u8[4096]{0}', space=vmem, size = 0x1000, scoped, tag = 'output window, operand 0']
    %7 = vsyncpa [#allocation3], 0
    %s8 = scalar_lea.sflag [#allocation3], 1
    %9 = vsyncpa %s8, 0
    %10 = vsyncpa [#allocation6], 0
    %s11 = scalar_lea.sflag [#allocation6], 1
    %12 = vsyncpa %s11, 0
    %13 = vsyncpa [#allocation4], 0
    %s14 = scalar_lea.sflag [#allocation4], 1
    %15 = vsyncpa %s14, 0
    loop: start=0, step=1, limit=4
    $region2: #{tpu_custom_call.1} parent=1 // loop_pre_header
      _
    $region3: #{tpu_custom_call.1} parent=1 // loop_header
      %s17 = sphi 0, %s21
      %p18 = scmp.ge.s32.totalorder %s17, 4
      %s24 = sphi 0, %s43
      %s25 = sphi 0, %s39
      %s26 = sphi 0, %s35
      %s27 = sphi 0, %s24
      %s28 = sphi 0, %s25
      %s29 = sphi 0, %s26
      %s30 = sphi 0, %s27
      %s31 = sphi 0, %s28
      %s32 = sphi 0, %s29
      %s54 = sphi 0, %s56
      %s57 = sphi 0, %s54
      %s58 = sphi 0, %s57
      %s74 = sphi 0, %s58
      %s88 = sphi 0, %s90
      %s91 = sphi 0, %s88
      %s92 = sphi 0, %s91
      %s108 = sphi 0, %s92
      %s116 = sphi 0, %s118
      %s119 = sphi 0, %s116
      %s120 = sphi 0, %s119
      %s136 = sphi 0, %s120
    $region4: #{tpu_custom_call.1} parent=1 // loop_header_branch
      %20 = sbr.rel (%p18) target = $region8
    $region5: #{tpu_custom_call.1} parent=1 // loop_body
      %s22 = ssub.s32 %s17, 1
      %s23 = ssub.s32 %s17, 2
      %s33 = sadd.s32 1, %s26
      %p34 = scmp.ge.s32.totalorder %s33, 1
      %s35 = scalar_select %p34, 0, %s33
      %s36 = sadd.s32 1, %s25
      %s37 = scalar_select %p34, %s36, %s25
      %p38 = scmp.ge.s32.totalorder %s37, 1
      %s39 = scalar_select %p38, 0, %s37
      %s40 = sadd.s32 1, %s24
      %s41 = scalar_select %p38, %s40, %s24
      %p42 = scmp.ge.s32.totalorder %s41, 2
      %s43 = scalar_select %p42, 0, %s41
      %s44 = sadd.s32 %s25, %s26
      %p45 = scmp.lt.s32.totalorder %s44, 0
      %s46 = scalar_select %p45, %s44, 0
      %s47 = sadd.s32 %s39, %s35
      %p48 = scmp.lt.s32.totalorder %s47, 0
      %s49 = scalar_select %p48, %s47, 0
      %s50 = ssub.s32 %s24, %s43
      %s51 = ssub.s32 %s46, %s49
      %s52 = sor.u32 %s50, %s51
      %p53 = scmp.eq.s32.totalorder %s52, 0
      %s55 = sadd.s32 %s54, 1
      %s56 = scalar_select %p53, %s54, %s55
      %p59 = pneg %p53
      %p60 = scmp.eq.s32.totalorder %s17, 1
      %p61 = por %p59, %p60
      %p62 = scmp.ne.s32.totalorder %s54, %s57
      %p63 = scmp.eq.s32.totalorder %s17, 0
      %p64 = por %p62, %p63
      %p65 = scmp.ne.s32.totalorder %s54, %s57
      %p66 = scmp.eq.s32.totalorder %s22, 1
      %p67 = por %p65, %p66
      %p68 = scmp.ne.s32.totalorder %s57, %s58
      %p69 = scmp.eq.s32.totalorder %s22, 0
      %p70 = por %p68, %p69
      %p71 = scmp.ne.s32.totalorder %s57, %s58
      %p72 = scmp.eq.s32.totalorder %s23, 1
      %p73 = por %p71, %p72
      %p75 = scmp.ne.s32.totalorder %s58, %s74
      %p76 = scmp.eq.s32.totalorder %s23, 0
      %p77 = por %p75, %p76
      %s78 = sadd.s32 %s25, %s26
      %p79 = scmp.lt.s32.totalorder %s78, 0
      %s80 = scalar_select %p79, %s78, 0
      %s81 = sadd.s32 %s39, %s35
      %p82 = scmp.lt.s32.totalorder %s81, 0
      %s83 = scalar_select %p82, %s81, 0
      %s84 = ssub.s32 %s24, %s43
      %s85 = ssub.s32 %s80, %s83
      %s86 = sor.u32 %s84, %s85
      %p87 = scmp.eq.s32.totalorder %s86, 0
      %s89 = sadd.s32 %s88, 1
      %s90 = scalar_select %p87, %s88, %s89
      %p93 = pneg %p87
      %p94 = scmp.eq.s32.totalorder %s17, 1
      %p95 = por %p93, %p94
      %p96 = scmp.ne.s32.totalorder %s88, %s91
      %p97 = scmp.eq.s32.totalorder %s17, 0
      %p98 = por %p96, %p97
      %p99 = scmp.ne.s32.totalorder %s88, %s91
      %p100 = scmp.eq.s32.totalorder %s22, 1
      %p101 = por %p99, %p100
      %p102 = scmp.ne.s32.totalorder %s91, %s92
      %p103 = scmp.eq.s32.totalorder %s22, 0
      %p104 = por %p102, %p103
      %p105 = scmp.ne.s32.totalorder %s91, %s92
      %p106 = scmp.eq.s32.totalorder %s23, 1
      %p107 = por %p105, %p106
      %p109 = scmp.ne.s32.totalorder %s92, %s108
      %p110 = scmp.eq.s32.totalorder %s23, 0
      %p111 = por %p109, %p110
      %s112 = sadd.s32 %s24, %s25
      %s113 = sadd.s32 %s43, %s39
      %s114 = ssub.s32 %s112, %s113
      %p115 = scmp.eq.s32.totalorder %s114, 0
      %s117 = sadd.s32 %s116, 1
      %s118 = scalar_select %p115, %s116, %s117
      %p121 = pneg %p115
      %p122 = scmp.eq.s32.totalorder %s17, 1
      %p123 = por %p121, %p122
      %p124 = scmp.ne.s32.totalorder %s116, %s119
      %p125 = scmp.eq.s32.totalorder %s17, 0
      %p126 = por %p124, %p125
      %p127 = scmp.ne.s32.totalorder %s116, %s119
      %p128 = scmp.eq.s32.totalorder %s22, 1
      %p129 = por %p127, %p128
      %p130 = scmp.ne.s32.totalorder %s119, %s120
      %p131 = scmp.eq.s32.totalorder %s22, 0
      %p132 = por %p130, %p131
      %p133 = scmp.ne.s32.totalorder %s119, %s120
      %p134 = scmp.eq.s32.totalorder %s23, 1
      %p135 = por %p133, %p134
      %p137 = scmp.ne.s32.totalorder %s120, %s136
      %p138 = scmp.eq.s32.totalorder %s23, 0
      %p139 = por %p137, %p138
      %p140 = scmp.le.s32.totalorder 1, %s17
      %p141 = scmp.lt.s32.totalorder %s17, 3
      %p142 = pnand %p140, %p141
      %p143 = pneg %p142
      // Predicated region
      $region9: #{tpu_custom_call.1} parent=5 // pred_check
        _
      $region10: #{tpu_custom_call.1} parent=5 // pred_check_branch
        %145 = sbr.rel (%p142) target = $region12
      $region11: #{tpu_custom_call.1} parent=5 // pred_region
        %s146 = ssub.s32 %s17, 1
      $region12: #{tpu_custom_call.1} parent=5 // pred_fallthru
        _
      %p147 = scmp.lt.s32.totalorder %s17, 2
      // Predicated region
      $region13: #{tpu_custom_call.1} parent=5 // pred_check
        %p148 = pneg %p147
      $region14: #{tpu_custom_call.1} parent=5 // pred_check_branch
        %150 = sbr.rel (%p148) target = $region16
      $region15: #{tpu_custom_call.1} parent=5 // pred_region
        // Predicated region
        $region17: #{tpu_custom_call.1} parent=15 // pred_check
          %p151 = pneg %p64
        $region18: #{tpu_custom_call.1} parent=15 // pred_check_branch
          %153 = sbr.rel (%p151) target = $region20
        $region19: #{tpu_custom_call.1} parent=15 // pred_region
          %s154 = sand.u32 %s54, 1
          %s155 = scalar_lea.sflag [#allocation3], %s154
          %s156 = sand.u32 %s54, 1
          %s157 = smul.addr %s156, 8
          %s158 = scalar_lea.vmem [#allocation2], %s157
          %s159 = sadd.s32 %s25, %s26
          %p160 = scmp.lt.s32.totalorder %s159, 0
          %s161 = scalar_select %p160, %s159, 0
          %s162 = smul.u32 2, %s161
          %164 = vsyncadd %s155, 0
          %s165 = smul.addr %s24, 2
          %s166 = sadd.s32 %s162, %s165
          %s167 = smul.addr %s166, 4
          %s168 = scalar_lea.hbm %s0, %s167
          %s170 = sshll.u32 %s168, 4
          %s171 = int_to_ptr.hbm [resolvable:$true] %s170
          %s172 = sshll.u32 %s158, 4
          %s173 = int_to_ptr.vmem [resolvable:$true] %s172
          %175 = dma.hbm_to_vmem [thread:$0]  %s171, 128, %s173, %s155
        $region20: #{tpu_custom_call.1} parent=15 // pred_fallthru
          _
        // Predicated region
        $region21: #{tpu_custom_call.1} parent=15 // pred_check
          %p176 = pneg %p98
        $region22: #{tpu_custom_call.1} parent=15 // pred_check_branch
          %178 = sbr.rel (%p176) target = $region24
        $region23: #{tpu_custom_call.1} parent=15 // pred_region
          %s179 = sand.u32 %s88, 1
          %s180 = scalar_lea.sflag [#allocation6], %s179
          %s181 = sand.u32 %s88, 1
          %s182 = smul.addr %s181, 2
          %s183 = scalar_lea.vmem [#allocation5], %s182
          %s184 = sadd.s32 %s25, %s26
          %p185 = scmp.lt.s32.totalorder %s184, 0
          %s186 = scalar_select %p185, %s184, 0
          %s187 = smul.u32 2, %s186
          %189 = vsyncadd %s180, 0
          %s190 = smul.addr %s24, 2
          %s191 = sadd.s32 %s187, %s190
          %s192 = scalar_lea.hbm %s1, %s191
          %s194 = sshll.u32 %s192, 4
          %s195 = int_to_ptr.hbm [resolvable:$true] %s194
          %s196 = sshll.u32 %s183, 4
          %s197 = int_to_ptr.vmem [resolvable:$true] %s196
          %199 = dma.hbm_to_vmem [thread:$0]  %s195, 32, %s197, %s180
        $region24: #{tpu_custom_call.1} parent=15 // pred_fallthru
          _
      $region16: #{tpu_custom_call.1} parent=5 // pred_fallthru
        _
      %p200 = scmp.le.s32.totalorder 1, %s17
      %p201 = scmp.lt.s32.totalorder %s17, 3
      %p202 = pnand %p200, %p201
      %p203 = pneg %p202
      // Predicated region
      $region25: #{tpu_custom_call.1} parent=5 // pred_check
        _
      $region26: #{tpu_custom_call.1} parent=5 // pred_check_branch
        %205 = sbr.rel (%p202) target = $region28
      $region27: #{tpu_custom_call.1} parent=5 // pred_region
        %s206 = ssub.s32 %s17, 1
        %s207 = sand.u32 %s57, 1
        %s208 = scalar_lea.sflag [#allocation3], %s207
        %s209 = sand.u32 %s57, 1
        %s210 = smul.addr %s209, 8
        %s211 = scalar_lea.vmem [#allocation2], %s210
        // Predicated region
        $region29: #{tpu_custom_call.1} parent=27 // pred_check
          %p212 = pneg %p70
        $region30: #{tpu_custom_call.1} parent=27 // pred_check_branch
          %214 = sbr.rel (%p212) target = $region32
        $region31: #{tpu_custom_call.1} parent=27 // pred_region
          %216 = dma.done %s208, 128
        $region32: #{tpu_custom_call.1} parent=27 // pred_fallthru
          _
        %s217 = sand.u32 %s91, 1
        %s218 = scalar_lea.sflag [#allocation6], %s217
        %s219 = sand.u32 %s91, 1
        %s220 = smul.addr %s219, 2
        %s221 = scalar_lea.vmem [#allocation5], %s220
        // Predicated region
        $region33: #{tpu_custom_call.1} parent=27 // pred_check
          %p222 = pneg %p104
        $region34: #{tpu_custom_call.1} parent=27 // pred_check_branch
          %224 = sbr.rel (%p222) target = $region36
        $region35: #{tpu_custom_call.1} parent=27 // pred_region
          %226 = dma.done %s218, 32
        $region36: #{tpu_custom_call.1} parent=27 // pred_fallthru
          _
        %s227 = sand.u32 %s57, 1
        %s228 = scalar_lea.sflag [#allocation3], %s227
        %s229 = sand.u32 %s57, 1
        %s230 = smul.addr %s229, 8
        %s231 = scalar_lea.vmem [#allocation2], %s230
        %p232 = pneg %p70
        %p233 = pneg %p67
        %s234 = sand.u32 %s91, 1
        %s235 = scalar_lea.sflag [#allocation6], %s234
        %s236 = sand.u32 %s91, 1
        %s237 = smul.addr %s236, 2
        %s238 = scalar_lea.vmem [#allocation5], %s237
        %p239 = pneg %p104
        %p240 = pneg %p101
        %p241 = pneg %p132
        %p242 = pneg %p129
        %s243 = sand.u32 %s119, 1
        %s244 = scalar_lea.sflag [#allocation4], %s243
        %s245 = sand.u32 %s119, 1
        %s246 = smul.addr %s245, 4
        %s247 = scalar_lea.vmem [#allocation7], %s246
        %s248 = sadd.s32 %s28, %s29
        %p249 = scmp.lt.s32.totalorder %s248, 0
        %s250 = scalar_select %p249, %s248, 0
        %s251 = smul.u32 2, %s250
        %s252 = sadd.s32 %s28, %s29
        %p253 = scmp.lt.s32.totalorder %s252, 0
        %s254 = scalar_select %p253, %s252, 0
        %s255 = smul.u32 2, %s254
        %s256 = sadd.s32 %s27, %s28
        %p257 = scmp.eq.s32.totalorder %s29, 0
        // Predicated region
        $region37: #{tpu_custom_call.1} parent=27 // pred_check
          %p258 = pneg %p257
        $region38: #{tpu_custom_call.1} parent=27 // pred_check_branch
          %260 = sbr.rel (%p258) target = $region40
        $region39: #{tpu_custom_call.1} parent=27 // pred_region
          %261 = vst [vmem:[%s247] sm:$0xf] 0.0
        $region40: #{tpu_custom_call.1} parent=27 // pred_fallthru
          _
        %v262 = vld [vmem:[%s211] sm:$0xff]
        %v263 = vld [vmem:[%s221] sm:$0x3]
        %s264 = sadd.s32 %s28, %s29
        %s265 = smul.u32 %s264, 256
        %v266 = vlaneseq
        %v267 = vand.u32 %v266, 127
        %v268 = vadd.s32 %v267, 128
        %v269 = vstv %s265
        %v270 = vadd.s32 %v269, %v267
        %v271 = vadd.s32 %v269, %v268
        %vm272 = vcmp.lt.s32.totalorder %v270, 256
        %vm273 = vcmp.lt.s32.totalorder %v271, 256
        %275 = vst [vmem:[#allocation1] ss:$2 sm:$0xff] %v262
        %v276 = vld.sshfl [vmem:[#allocation1] sm:$0xff pattern:$0x75316420]
        %v277 = vld.sshfl [vmem:[#allocation1 + $0x8] sm:$0xff pattern:$0x75316420]
        %vm280 = vcmask 1043456
        %v281 = vsel %vm280, %v276, -inf
        %v282 = vrot.slane %v281, 4
        %v283 = vmax.f32 %v281, %v282
        %v284 = vrot.slane %v283, 2
        %v285 = vmax.f32 %v283, %v284
        %v286 = vrot.slane %v285, 1
        %v287 = vmax.f32 %v285, %v286
        %v288 = vsel %vm280, %v277, -inf
        %v289 = vrot.slane %v288, 4
        %v290 = vmax.f32 %v288, %v289
        %v291 = vrot.slane %v290, 2
        %v292 = vmax.f32 %v290, %v291
        %v293 = vrot.slane %v292, 1
        %v294 = vmax.f32 %v292, %v293
        %v297 = vrot.slane %v294, 4
        %v298 = vsel %vm280, %v287, %v297
        %v300 = vsub.f32 %v262, %v298
        %v301 = vmul.f32 %v300, 1.442695
        %v302 = vpow.pop %v301
        %304 = vst [vmem:[#allocation1] ss:$2 sm:$0xff] %v302
        %v305 = vld.sshfl [vmem:[#allocation1] sm:$0xff pattern:$0x75316420]
        %v306 = vld.sshfl [vmem:[#allocation1 + $0x8] sm:$0xff pattern:$0x75316420]
        %v309 = vsel %vm280, %v305, 0.0
        %v310 = vrot.slane %v309, 4
        %v311 = vadd.f32 %v309, %v310
        %v312 = vrot.slane %v311, 2
        %v313 = vadd.f32 %v311, %v312
        %v314 = vrot.slane %v313, 1
        %v315 = vadd.f32 %v313, %v314
        %v316 = vsel %vm280, %v306, 0.0
        %v317 = vrot.slane %v316, 4
        %v318 = vadd.f32 %v316, %v317
        %v319 = vrot.slane %v318, 2
        %v320 = vadd.f32 %v318, %v319
        %v321 = vrot.slane %v320, 1
        %v322 = vadd.f32 %v320, %v321
        %v323 = vlog2.pop %v315
        %v324 = vmul.f32 %v323, 0.6931472
        %v325 = vlog2.pop %v322
        %v326 = vmul.f32 %v325, 0.6931472
        %v327 = vadd.f32 %v287, %v324
        %v328 = vadd.f32 %v294, %v326
        %v329 = vlaneseq
        %v330 = vshrl.u32 %v329, 7
        %v331 = vperm.slane %v263, 0
        %v332 = vperm.slane %v263, 1
        %vm333 = vcmp.eq.s32.totalorder %v330, %v331
        %vm334 = vcmp.eq.s32.totalorder %v330, %v332
        %335 = vst [vmem:[#allocation1] ss:$2 sm:$0xff] %v262
        %v336 = vld.sshfl [vmem:[#allocation1] sm:$0xff pattern:$0x75316420]
        %v337 = vld.sshfl [vmem:[#allocation1 + $0x8] sm:$0xff pattern:$0x75316420]
        %v340 = vsel %vm333, %v336, 0.0
        %v341 = vsel %vm334, %v337, 0.0
        %v342 = vsel %vm280, %v340, 0.0
        %v343 = vrot.slane %v342, 4
        %v344 = vadd.f32 %v342, %v343
        %v345 = vrot.slane %v344, 2
        %v346 = vadd.f32 %v344, %v345
        %v347 = vrot.slane %v346, 1
        %v348 = vadd.f32 %v346, %v347
        %v349 = vsel %vm280, %v341, 0.0
        %v350 = vrot.slane %v349, 4
        %v351 = vadd.f32 %v349, %v350
        %v352 = vrot.slane %v351, 2
        %v353 = vadd.f32 %v351, %v352
        %v354 = vrot.slane %v353, 1
        %v355 = vadd.f32 %v353, %v354
        %vm356 = vcmp.ne.s32.totalorder %v263, 4294967295
        %v357 = vsel %vm272, 1, 0
        %v358 = vsel %vm273, 1, 0
        %v359 = vrot.slane %v358, 7
        %vm360 = vcmask 1040384
        %v361 = vsel %vm360, %v357, %v359
        %vm362 = vcmp.ne.s32.totalorder %v361, 0
        %vm363 = vmand %vm356, %vm362
        %v364 = vsub.f32 %v327, %v348
        %v365 = vsub.f32 %v328, %v355
        %v368 = vrot.slane %v365, 7
        %v369 = vsel %vm360, %v364, %v368
        %v371 = vsel %vm363, %v369, 0.0
        %v372 = vld [vmem:[%s247] ss:$2 sm:$0x3]
        %v373 = vadd.f32 %v372, %v371
        %v374 = vlaneseq
        %vm375 = vcmp.ge.s32.totalorder %v374, 0
        %vm376 = vcmp.lt.s32.totalorder %v374, 256
        %vm377 = vmand %vm375, %vm376
        %378 = vst.msk [vmem:[%s247] ss:$2 sm:$0x3] %vm377, %v373
        %s379 = scalar_lea.vmem %s247, 1 [#allocation7]
        %v380 = vld [vmem:[%s379] ss:$2 sm:$0x3]
        %v381 = vsel %vm363, 1, 0
        %v382 = vcvt.s32.f32 %v381
        %v383 = vadd.f32 %v380, %v382
        %384 = vst.msk [vmem:[%s379] ss:$2 sm:$0x3] %vm377, %v383
        %s385 = sand.u32 %s119, 1
        %s386 = scalar_lea.sflag [#allocation4], %s385
        %s387 = sand.u32 %s119, 1
        %s388 = smul.addr %s387, 4
        %s389 = scalar_lea.vmem [#allocation7], %s388
        // Predicated region
        $region41: #{tpu_custom_call.1} parent=27 // pred_check
          %p390 = pneg %p129
        $region42: #{tpu_custom_call.1} parent=27 // pred_check_branch
          %392 = sbr.rel (%p390) target = $region44
        $region43: #{tpu_custom_call.1} parent=27 // pred_region
          %s393 = sadd.s32 %s27, %s28
          %395 = vsyncadd %s386, 0
          %s396 = smul.addr %s393, 2
          %s397 = smul.addr %s396, 2
          %s398 = scalar_lea.hbm %s2, %s397
          %s400 = sshll.u32 %s389, 4
          %s401 = int_to_ptr.vmem [resolvable:$true] %s400
          %s402 = sshll.u32 %s398, 4
          %s403 = int_to_ptr.hbm [resolvable:$true] %s402
          %405 = dma.vmem_to_hbm [thread:$0]  %s401, 64, %s403, %s386
        $region44: #{tpu_custom_call.1} parent=27 // pred_fallthru
          _
      $region28: #{tpu_custom_call.1} parent=5 // pred_fallthru
        _
      %p406 = scmp.le.s32.totalorder 2, %s17
      // Predicated region
      $region45: #{tpu_custom_call.1} parent=5 // pred_check
        %p407 = pneg %p406
      $region46: #{tpu_custom_call.1} parent=5 // pred_check_branch
        %409 = sbr.rel (%p407) target = $region48
      $region47: #{tpu_custom_call.1} parent=5 // pred_region
        %s410 = ssub.s32 %s17, 2
        // Predicated region
        $region49: #{tpu_custom_call.1} parent=47 // pred_check
          %p411 = pneg %p135
        $region50: #{tpu_custom_call.1} parent=47 // pred_check_branch
          %413 = sbr.rel (%p411) target = $region52
        $region51: #{tpu_custom_call.1} parent=47 // pred_region
          %s414 = sand.u32 %s120, 1
          %s415 = scalar_lea.sflag [#allocation4], %s414
          %s416 = sand.u32 %s120, 1
          %s417 = smul.addr %s416, 4
          %s418 = scalar_lea.vmem [#allocation7], %s417
          %420 = dma.done %s415, 64
        $region52: #{tpu_custom_call.1} parent=47 // pred_fallthru
          _
      $region48: #{tpu_custom_call.1} parent=5 // pred_fallthru
        _
    $region6: #{tpu_custom_call.1} parent=1 // loop_footer
      %s21 = sadd.s32 1, %s17
    $region7: #{tpu_custom_call.1} parent=1 // loop_footer_branch
      %16 = sbr.rel target = $region3
    $region8: #{tpu_custom_call.1} parent=1 // loop_exit
      _
    %421 = vsyncpa [#allocation3], 1
    %s422 = scalar_lea.sflag [#allocation3], 1
    %423 = vsyncpa %s422, 1
    %424 = vsyncpa [#allocation6], 1
    %s425 = scalar_lea.sflag [#allocation6], 1
    %426 = vsyncpa %s425, 1
    %427 = vsyncpa [#allocation4], 1
    %s428 = scalar_lea.sflag [#allocation4], 1
    %429 = vsyncpa %s428, 1

</llo_original>
